<compile_context>
chip_gen: v6e
topology: v6e:2x2x1
jax: 0.10.0
libtpu: 0.0.40
codegen_flags: <defaults>
</compile_context>

<pallas_src>
import jax
import jax.numpy as jnp
from jax.experimental import pallas as pl
from jax.experimental.pallas import tpu as pltpu


def _round_up(x: int, m: int) -> int:
    return (x + m - 1) // m * m


def _make_kernel(num_hidden_linears: int):
    """num_hidden_linears = rgbnet_bg_depth - 1 (Linear+ReLU layers)."""

    def kernel(pts_ref, dirs_ref, *refs):
        # refs = (w0T, b0, w1T, b1, ..., wfhT, wfdT, bf, out_ref)
        param_refs = refs[:-1]
        out_ref = refs[-1]

        h = pts_ref[...]                     # (dim0, tile_m) bf16
        d = dirs_ref[...]                    # (enc,  tile_m) bf16

        idx = 0
        for _ in range(num_hidden_linears):
            w_t = param_refs[idx][...]       # (out, in)  bf16, VMEM-resident
            b = param_refs[idx + 1][...]     # (out, 1)   f32
            idx += 2
            z = jnp.dot(w_t, h, preferred_element_type=jnp.float32) + b
            h = jnp.maximum(z, 0.0).astype(w_t.dtype)   # ReLU, back to bf16

        wfh_t = param_refs[idx][...]         # (3, width) bf16
        wfd_t = param_refs[idx + 1][...]     # (3, enc)   bf16
        bf = param_refs[idx + 2][...]        # (3, 1)     f32
        # cat([h, dirs], -1) @ Wf  ==  Wf[:w].T @ h_t + Wf[w:].T @ dirs_t
        out_t = (jnp.dot(wfh_t, h, preferred_element_type=jnp.float32)
                 + jnp.dot(wfd_t, d, preferred_element_type=jnp.float32)
                 + bf)                       # (3, tile_m) f32, lane-dense
        out_ref[...] = out_t.astype(out_ref.dtype)

    return kernel


def nerf_bg_forward(points, dirs, params, *, tile_m=4096,
                    compute_dtype=jnp.bfloat16):
    """params = [(W, b), ...] hidden stack + final (Wf (width+enc, 3), bf (3,))."""
    n, dim0 = points.shape
    enc = dirs.shape[1]
    width = params[0][0].shape[1]
    num_hidden = len(params) - 1

    assert tile_m % 128 == 0, "tile_m must be a multiple of 128"
    # Shrink the tile for small problems; keep >= 2 grid steps when possible so
    # the "parallel" grid axis can shard across v7x's two TensorCores.
    tile_m = min(tile_m, _round_up(n, 128))
    if _round_up(n, tile_m) // tile_m < 2 and tile_m % 256 == 0 and tile_m >= 512:
        tile_m //= 2
    n_pad = _round_up(n, tile_m)

    # Lane-dense, transposed bf16 streams: (dim0, n_pad) and (enc, n_pad).
    pts = points.astype(compute_dtype)
    drs = dirs.astype(compute_dtype)
    if n_pad != n:
        pts = jnp.pad(pts, ((0, n_pad - n), (0, 0)))
        drs = jnp.pad(drs, ((0, n_pad - n), (0, 0)))
    pts_t = pts.T                            # (dim0, n_pad)
    drs_t = drs.T                            # (enc,  n_pad)

    # Host-side param prep: hidden weights transposed to (out, in) and cast;
    # final layer pre-split into the h-part and dirs-part; biases kept f32 (out, 1).
    flat_params, param_specs = [], []

    def _add(p):
        flat_params.append(p)
        param_specs.append(pl.BlockSpec(p.shape, lambda i: (0, 0)))

    for (w, b) in params[:-1]:
        _add(jnp.asarray(w, jnp.float32).T.astype(compute_dtype))   # (out, in)
        _add(jnp.asarray(b, jnp.float32).reshape(-1, 1))            # (out, 1)
    wf, bf = params[-1]
    wf = jnp.asarray(wf, jnp.float32)
    _add(wf[:width].T.astype(compute_dtype))                        # (3, width)
    _add(wf[width:].T.astype(compute_dtype))                        # (3, enc)
    _add(jnp.asarray(bf, jnp.float32).reshape(-1, 1))               # (3, 1)

    kernel = _make_kernel(num_hidden)
    grid = (n_pad // tile_m,)

    out_t = pl.pallas_call(
        kernel,
        out_shape=jax.ShapeDtypeStruct((3, n_pad), jnp.float32),
        grid_spec=pltpu.PrefetchScalarGridSpec(
            num_scalar_prefetch=0,
            grid=grid,
            # Default double-buffering on the two streamed inputs; constant
            # index_maps keep the (tiny) weights resident in VMEM.
            in_specs=[pl.BlockSpec((dim0, tile_m), lambda i: (0, i)),
                      pl.BlockSpec((enc, tile_m), lambda i: (0, i))]
                     + param_specs,
            out_specs=pl.BlockSpec((3, tile_m), lambda i: (0, i)),
        ),
        compiler_params=pltpu.CompilerParams(
            dimension_semantics=("parallel",),
            vmem_limit_bytes=32 * 1024 * 1024,
        ),
    )(pts_t, drs_t, *flat_params)

    return out_t[:, :n].T                                  # back to (N, 3) f32


def init_params(key, dim0_bg, width, depth, enc_dirs):
    """Deterministic synthetic init matching the torch module's shapes."""
    params = []
    in_dim = dim0_bg
    for _ in range(depth - 1):          # Linear(dim0, w) + (depth-2) Linear(w, w)
        key, kw, kb = jax.random.split(key, 3)
        scale = 1.0 / jnp.sqrt(in_dim)
        w = jax.random.uniform(kw, (in_dim, width), jnp.float32, -scale, scale)
        b = jax.random.uniform(kb, (width,), jnp.float32, -scale, scale)
        params.append((w, b))
        in_dim = width
    # final directions layer: Linear(width + enc_dirs, 3), bias init to 0
    key, kw = jax.random.split(key)
    scale = 1.0 / jnp.sqrt(width + enc_dirs)
    wf = jax.random.uniform(kw, (width + enc_dirs, 3), jnp.float32, -scale, scale)
    bf = jnp.zeros((3,), jnp.float32)
    params.append((wf, bf))
    return params


def reference_forward(points, dirs, params, compute_dtype=jnp.bfloat16):
    """Pure-JAX reference using the same bf16-in / f32-accumulate numerics."""
    width = params[0][0].shape[1]
    h = points.astype(compute_dtype)
    for (w, b) in params[:-1]:
        z = (jnp.dot(h, jnp.asarray(w, jnp.float32).astype(compute_dtype),
                     preferred_element_type=jnp.float32)
             + jnp.asarray(b, jnp.float32))
        h = jnp.maximum(z, 0.0).astype(compute_dtype)
    wf, bf = params[-1]
    wf = jnp.asarray(wf, jnp.float32)
    d = dirs.astype(compute_dtype)
    return (jnp.dot(h, wf[:width].astype(compute_dtype),
                    preferred_element_type=jnp.float32)
            + jnp.dot(d, wf[width:].astype(compute_dtype),
                      preferred_element_type=jnp.float32)
            + jnp.asarray(bf, jnp.float32))


if __name__ == "__main__":
    # Small shapes consistent with the module. N is deliberately not a multiple
    # of 128 to exercise the pad / slice path.
    dim0_bg = 32
    rgbnet_bg_width = 64
    rgbnet_bg_depth = 3       # => 2 Linear+ReLU layers in rgbnet_bg
    encoding_dirs = 32
    N = 300                   # number of sampled background points

    key = jax.random.PRNGKey(0)
    key, kp, kd = jax.random.split(key, 3)
    points = jax.random.normal(kp, (N, dim0_bg), jnp.float32)
    dirs = jax.random.normal(kd, (N, encoding_dirs), jnp.float32)

    params = init_params(key, dim0_bg, rgbnet_bg_width,
                         rgbnet_bg_depth, encoding_dirs)

    out = nerf_bg_forward(points, dirs, params, tile_m=4096)
    out = jax.block_until_ready(out)

    ref = reference_forward(points, dirs, params)
    assert out.shape == (N, 3)
    assert jnp.allclose(out, ref, atol=1e-3, rtol=1e-3), "mismatch vs reference"

    print("KERNEL_OK")
</pallas_src>

<mosaic_0001>
module attributes {stable_mosaic.version = 11 : i64} {
  func.func @kernel(%arg0: i32, %arg1: memref<32x384xbf16, #tpu.memory_space<vmem>>, %arg2: memref<32x384xbf16, #tpu.memory_space<vmem>>, %arg3: memref<64x32xbf16, #tpu.memory_space<vmem>>, %arg4: memref<64x1xf32, #tpu.memory_space<vmem>>, %arg5: memref<64x64xbf16, #tpu.memory_space<vmem>>, %arg6: memref<64x1xf32, #tpu.memory_space<vmem>>, %arg7: memref<3x64xbf16, #tpu.memory_space<vmem>>, %arg8: memref<3x32xbf16, #tpu.memory_space<vmem>>, %arg9: memref<3x1xf32, #tpu.memory_space<vmem>>, %arg10: memref<3x384xf32, #tpu.memory_space<vmem>>) attributes {dimension_semantics = [#tpu.dimension_semantics<parallel>], iteration_bounds = array<i64: 1>, scalar_prefetch = 0 : i64, scratch_operands = 0 : i64, tpu.core_type = #tpu.core_type<tc>, window_params = [{transform_indices = @transform_0, window_bounds = array<i64: 32, 384>}, {transform_indices = @transform_1, window_bounds = array<i64: 32, 384>}, {pipeline_mode = #tpu.pipeline_mode<synchronous>, transform_indices = @transform_2, window_bounds = array<i64: 64, 32>}, {pipeline_mode = #tpu.pipeline_mode<synchronous>, transform_indices = @transform_3, window_bounds = array<i64: 64, 1>}, {pipeline_mode = #tpu.pipeline_mode<synchronous>, transform_indices = @transform_4, window_bounds = array<i64: 64, 64>}, {pipeline_mode = #tpu.pipeline_mode<synchronous>, transform_indices = @transform_5, window_bounds = array<i64: 64, 1>}, {pipeline_mode = #tpu.pipeline_mode<synchronous>, transform_indices = @transform_6, window_bounds = array<i64: 3, 64>}, {pipeline_mode = #tpu.pipeline_mode<synchronous>, transform_indices = @transform_7, window_bounds = array<i64: 3, 32>}, {pipeline_mode = #tpu.pipeline_mode<synchronous>, transform_indices = @transform_8, window_bounds = array<i64: 3, 1>}, {transform_indices = @transform_9, window_bounds = array<i64: 3, 384>}]} {
    %c0 = arith.constant 0 : index
    %c0_0 = arith.constant 0 : index
    %0 = vector.load %arg1[%c0, %c0_0] : memref<32x384xbf16, #tpu.memory_space<vmem>>, vector<32x384xbf16>
    %c0_1 = arith.constant 0 : index
    %c0_2 = arith.constant 0 : index
    %1 = vector.load %arg2[%c0_1, %c0_2] : memref<32x384xbf16, #tpu.memory_space<vmem>>, vector<32x384xbf16>
    %c0_3 = arith.constant 0 : index
    %c0_4 = arith.constant 0 : index
    %2 = vector.load %arg3[%c0_3, %c0_4] : memref<64x32xbf16, #tpu.memory_space<vmem>>, vector<64x32xbf16>
    %c0_5 = arith.constant 0 : index
    %c0_6 = arith.constant 0 : index
    %3 = vector.load %arg4[%c0_5, %c0_6] : memref<64x1xf32, #tpu.memory_space<vmem>>, vector<64x1xf32>
    %cst = arith.constant dense<0.000000e+00> : vector<64x384xf32>
    %4 = tpu.matmul %2, %0, %cst {dimension_numbers = #tpu.dot_dimension_numbers<[1], [0], [0], [1], [0, 0, 1, 1], [], []>} : vector<64x32xbf16>, vector<32x384xbf16>, vector<64x384xf32> -> vector<64x384xf32>
    %5 = vector.broadcast %3 : vector<64x1xf32> to vector<64x384xf32>
    %6 = arith.addf %4, %5 : vector<64x384xf32>
    %cst_7 = arith.constant 0.000000e+00 : f32
    %7 = vector.broadcast %cst_7 : f32 to vector<64x384xf32>
    %8 = arith.maximumf %6, %7 : vector<64x384xf32>
    %9 = arith.truncf %8 : vector<64x384xf32> to vector<64x384xbf16>
    %c0_8 = arith.constant 0 : index
    %c0_9 = arith.constant 0 : index
    %10 = vector.load %arg5[%c0_8, %c0_9] : memref<64x64xbf16, #tpu.memory_space<vmem>>, vector<64x64xbf16>
    %c0_10 = arith.constant 0 : index
    %c0_11 = arith.constant 0 : index
    %11 = vector.load %arg6[%c0_10, %c0_11] : memref<64x1xf32, #tpu.memory_space<vmem>>, vector<64x1xf32>
    %cst_12 = arith.constant dense<0.000000e+00> : vector<64x384xf32>
    %12 = tpu.matmul %10, %9, %cst_12 {dimension_numbers = #tpu.dot_dimension_numbers<[1], [0], [0], [1], [0, 0, 1, 1], [], []>} : vector<64x64xbf16>, vector<64x384xbf16>, vector<64x384xf32> -> vector<64x384xf32>
    %13 = vector.broadcast %11 : vector<64x1xf32> to vector<64x384xf32>
    %14 = arith.addf %12, %13 : vector<64x384xf32>
    %cst_13 = arith.constant 0.000000e+00 : f32
    %15 = vector.broadcast %cst_13 : f32 to vector<64x384xf32>
    %16 = arith.maximumf %14, %15 : vector<64x384xf32>
    %17 = arith.truncf %16 : vector<64x384xf32> to vector<64x384xbf16>
    %c0_14 = arith.constant 0 : index
    %c0_15 = arith.constant 0 : index
    %18 = vector.load %arg7[%c0_14, %c0_15] : memref<3x64xbf16, #tpu.memory_space<vmem>>, vector<3x64xbf16>
    %c0_16 = arith.constant 0 : index
    %c0_17 = arith.constant 0 : index
    %19 = vector.load %arg8[%c0_16, %c0_17] : memref<3x32xbf16, #tpu.memory_space<vmem>>, vector<3x32xbf16>
    %c0_18 = arith.constant 0 : index
    %c0_19 = arith.constant 0 : index
    %20 = vector.load %arg9[%c0_18, %c0_19] : memref<3x1xf32, #tpu.memory_space<vmem>>, vector<3x1xf32>
    %cst_20 = arith.constant dense<0.000000e+00> : vector<3x384xf32>
    %21 = tpu.matmul %18, %17, %cst_20 {dimension_numbers = #tpu.dot_dimension_numbers<[1], [0], [0], [1], [0, 0, 1, 1], [], []>} : vector<3x64xbf16>, vector<64x384xbf16>, vector<3x384xf32> -> vector<3x384xf32>
    %cst_21 = arith.constant dense<0.000000e+00> : vector<3x384xf32>
    %22 = tpu.matmul %19, %1, %cst_21 {dimension_numbers = #tpu.dot_dimension_numbers<[1], [0], [0], [1], [0, 0, 1, 1], [], []>} : vector<3x32xbf16>, vector<32x384xbf16>, vector<3x384xf32> -> vector<3x384xf32>
    %23 = arith.addf %21, %22 : vector<3x384xf32>
    %24 = vector.broadcast %20 : vector<3x1xf32> to vector<3x384xf32>
    %25 = arith.addf %23, %24 : vector<3x384xf32>
    %c0_22 = arith.constant 0 : index
    %c0_23 = arith.constant 0 : index
    %26 = vector.load %arg10[%c0_22, %c0_23] : memref<3x384xf32, #tpu.memory_space<vmem>>, vector<3x384xf32>
    tpu.vector_store %arg10[%c0_22, %c0_23], %25 {strides = array<i32>} : memref<3x384xf32, #tpu.memory_space<vmem>>, vector<3x384xf32>,
    return
  }
  func.func @transform_0(%arg0: i32) -> (i32, i32) {
    %c0_i32 = arith.constant 0 : i32
    %c0_i32_0 = arith.constant 0 : i32
    return %c0_i32, %arg0 : i32, i32
  }
  func.func @transform_1(%arg0: i32) -> (i32, i32) {
    %c0_i32 = arith.constant 0 : i32
    %c0_i32_0 = arith.constant 0 : i32
    return %c0_i32, %arg0 : i32, i32
  }
  func.func @transform_2(%arg0: i32) -> (i32, i32) {
    %c0_i32 = arith.constant 0 : i32
    %c0_i32_0 = arith.constant 0 : i32
    %c0_i32_1 = arith.constant 0 : i32
    return %c0_i32, %c0_i32_0 : i32, i32
  }
  func.func @transform_3(%arg0: i32) -> (i32, i32) {
    %c0_i32 = arith.constant 0 : i32
    %c0_i32_0 = arith.constant 0 : i32
    %c0_i32_1 = arith.constant 0 : i32
    return %c0_i32, %c0_i32_0 : i32, i32
  }
  func.func @transform_4(%arg0: i32) -> (i32, i32) {
    %c0_i32 = arith.constant 0 : i32
    %c0_i32_0 = arith.constant 0 : i32
    %c0_i32_1 = arith.constant 0 : i32
    return %c0_i32, %c0_i32_0 : i32, i32
  }
  func.func @transform_5(%arg0: i32) -> (i32, i32) {
    %c0_i32 = arith.constant 0 : i32
    %c0_i32_0 = arith.constant 0 : i32
    %c0_i32_1 = arith.constant 0 : i32
    return %c0_i32, %c0_i32_0 : i32, i32
  }
  func.func @transform_6(%arg0: i32) -> (i32, i32) {
    %c0_i32 = arith.constant 0 : i32
    %c0_i32_0 = arith.constant 0 : i32
    %c0_i32_1 = arith.constant 0 : i32
    return %c0_i32, %c0_i32_0 : i32, i32
  }
  func.func @transform_7(%arg0: i32) -> (i32, i32) {
    %c0_i32 = arith.constant 0 : i32
    %c0_i32_0 = arith.constant 0 : i32
    %c0_i32_1 = arith.constant 0 : i32
    return %c0_i32, %c0_i32_0 : i32, i32
  }
  func.func @transform_8(%arg0: i32) -> (i32, i32) {
    %c0_i32 = arith.constant 0 : i32
    %c0_i32_0 = arith.constant 0 : i32
    %c0_i32_1 = arith.constant 0 : i32
    return %c0_i32, %c0_i32_0 : i32, i32
  }
  func.func @transform_9(%arg0: i32) -> (i32, i32) {
    %c0_i32 = arith.constant 0 : i32
    %c0_i32_0 = arith.constant 0 : i32
    return %c0_i32, %arg0 : i32, i32
  }
}

</mosaic_0001>

<llo_original>
// kernel: tpu_custom_call.1
$region0: #{tpu_custom_call.1}
  #allocation0 [shape = 'u32[]', space=smem, size = 0x4, offset = 0x4, fixed_abs, tag = 'smem constant byte address 0x4 - core index']
  #allocation1 [shape = 'u32[144,128]{1,0:T(1,128)}', space=vmem, size = 0x12000, scoped, tag = 'internal scratch']
  %s0 = inlined_call_operand.vmem [shape: bf16[32,384], index: 0, kind: input, shape index: {}]
  %s1 = inlined_call_operand.vmem [shape: bf16[32,384], index: 1, kind: input, shape index: {}]
  %s2 = inlined_call_operand.vmem [shape: bf16[64,32], index: 2, kind: input, shape index: {}]
  %s3 = inlined_call_operand.vmem [shape: f32[64,1], index: 3, kind: input, shape index: {}]
  %s4 = inlined_call_operand.vmem [shape: bf16[64,64], index: 4, kind: input, shape index: {}]
  %s5 = inlined_call_operand.vmem [shape: f32[64,1], index: 5, kind: input, shape index: {}]
  %s6 = inlined_call_operand.vmem [shape: bf16[3,64], index: 6, kind: input, shape index: {}]
  %s7 = inlined_call_operand.vmem [shape: bf16[3,32], index: 7, kind: input, shape index: {}]
  %s8 = inlined_call_operand.vmem [shape: f32[3,1], index: 8, kind: input, shape index: {}]
  %s9 = inlined_call_operand.hbm [shape: f32[3,384], index: 9, kind: output, shape index: {}]
  %s10 = sld [smem:[#allocation0]]
  $region46: #{tpu_custom_call.1} parent=0
    _
  %s12 = ssub.s32 1, %s10
  %s13 = scalar_select 0, %s12, %s10
  $region1: #{tpu_custom_call.1} parent=0
    #allocation2 [shape = 'u8[6144]{0}', space=vmem, size = 0x1800, scoped, tag = 'output window, operand 0, single buffered']
    #allocation3 [shape = 's32[1]{0}', space=sflag, size = 0x4, scoped, tag = 'scoped memory for tpu_custom_call.1']
    %14 = vsyncpa [#allocation3], 0
    // Predicated region
    $region2: #{tpu_custom_call.1} parent=1 // pred_check
      _
    $region3: #{tpu_custom_call.1} parent=1 // pred_check_branch
      %16 = sbr.rel (0) target = $region5
    $region4: #{tpu_custom_call.1} parent=1 // pred_region
      _
    $region5: #{tpu_custom_call.1} parent=1 // pred_fallthru
      _
    // Predicated region
    $region6: #{tpu_custom_call.1} parent=1 // pred_check
      _
    $region7: #{tpu_custom_call.1} parent=1 // pred_check_branch
      %18 = sbr.rel (0) target = $region9
    $region8: #{tpu_custom_call.1} parent=1 // pred_region
      _
    $region9: #{tpu_custom_call.1} parent=1 // pred_fallthru
      _
    // Predicated region
    $region10: #{tpu_custom_call.1} parent=1 // pred_check
      _
    $region11: #{tpu_custom_call.1} parent=1 // pred_check_branch
      %20 = sbr.rel (0) target = $region13
    $region12: #{tpu_custom_call.1} parent=1 // pred_region
      _
    $region13: #{tpu_custom_call.1} parent=1 // pred_fallthru
      _
    // Predicated region
    $region14: #{tpu_custom_call.1} parent=1 // pred_check
      _
    $region15: #{tpu_custom_call.1} parent=1 // pred_check_branch
      %22 = sbr.rel (0) target = $region17
    $region16: #{tpu_custom_call.1} parent=1 // pred_region
      _
    $region17: #{tpu_custom_call.1} parent=1 // pred_fallthru
      _
    // Predicated region
    $region18: #{tpu_custom_call.1} parent=1 // pred_check
      _
    $region19: #{tpu_custom_call.1} parent=1 // pred_check_branch
      %24 = sbr.rel (0) target = $region21
    $region20: #{tpu_custom_call.1} parent=1 // pred_region
      _
    $region21: #{tpu_custom_call.1} parent=1 // pred_fallthru
      _
    // Predicated region
    $region22: #{tpu_custom_call.1} parent=1 // pred_check
      _
    $region23: #{tpu_custom_call.1} parent=1 // pred_check_branch
      %26 = sbr.rel (0) target = $region25
    $region24: #{tpu_custom_call.1} parent=1 // pred_region
      _
    $region25: #{tpu_custom_call.1} parent=1 // pred_fallthru
      _
    // Predicated region
    $region26: #{tpu_custom_call.1} parent=1 // pred_check
      _
    $region27: #{tpu_custom_call.1} parent=1 // pred_check_branch
      %28 = sbr.rel (0) target = $region29
    $region28: #{tpu_custom_call.1} parent=1 // pred_region
      _
    $region29: #{tpu_custom_call.1} parent=1 // pred_fallthru
      _
    // Predicated region
    $region30: #{tpu_custom_call.1} parent=1 // pred_check
      _
    $region31: #{tpu_custom_call.1} parent=1 // pred_check_branch
      %30 = sbr.rel (0) target = $region33
    $region32: #{tpu_custom_call.1} parent=1 // pred_region
      _
    $region33: #{tpu_custom_call.1} parent=1 // pred_fallthru
      _
    // Predicated region
    $region34: #{tpu_custom_call.1} parent=1 // pred_check
      _
    $region35: #{tpu_custom_call.1} parent=1 // pred_check_branch
      %32 = sbr.rel (0) target = $region37
    $region36: #{tpu_custom_call.1} parent=1 // pred_region
      _
    $region37: #{tpu_custom_call.1} parent=1 // pred_fallthru
      _
    %v34 = vld [vmem:[%s0] sm:$0xff]
    %v35 = vld [vmem:[%s0 + $0x8] sm:$0xf]
    %v36 = vld [vmem:[%s0 + $0xc] sm:$0xff]
    %v37 = vld [vmem:[%s0 + $0x14] sm:$0xf]
    %v38 = vld [vmem:[%s0 + $0x18] sm:$0xff]
    %v39 = vld [vmem:[%s0 + $0x20] sm:$0xf]
    %v40 = vld [vmem:[%s0 + $0x24] sm:$0xff]
    %v41 = vld [vmem:[%s0 + $0x2c] sm:$0xf]
    %v42 = vld [vmem:[%s1] sm:$0xff]
    %v43 = vld [vmem:[%s1 + $0x8] sm:$0xf]
    %v44 = vld [vmem:[%s1 + $0xc] sm:$0xff]
    %v45 = vld [vmem:[%s1 + $0x14] sm:$0xf]
    %v46 = vld [vmem:[%s1 + $0x18] sm:$0xff]
    %v47 = vld [vmem:[%s1 + $0x20] sm:$0xf]
    %v48 = vld [vmem:[%s1 + $0x24] sm:$0xff]
    %v49 = vld [vmem:[%s1 + $0x2c] sm:$0xf]
    %v50 = vld [vmem:[%s2] sm:$0xf]
    %v51 = vld [vmem:[%s2 + $0x4] sm:$0xf]
    %v52 = vld [vmem:[%s2 + $0x8] sm:$0xf]
    %v53 = vld [vmem:[%s2 + $0xc] sm:$0xf]
    %v54 = vld [vmem:[%s2 + $0x10] sm:$0xf]
    %v55 = vld [vmem:[%s2 + $0x14] sm:$0xf]
    %v56 = vld [vmem:[%s2 + $0x18] sm:$0xf]
    %v57 = vld [vmem:[%s2 + $0x1c] sm:$0xf]
    %v58 = vld [vmem:[%s3] sm:$0xff]
    %v59 = vld [vmem:[%s3 + $0x8] sm:$0xff]
    %v60 = vld [vmem:[%s3 + $0x10] sm:$0xff]
    %v61 = vld [vmem:[%s3 + $0x18] sm:$0xff]
    %v62 = vld [vmem:[%s3 + $0x20] sm:$0xff]
    %v63 = vld [vmem:[%s3 + $0x28] sm:$0xff]
    %v64 = vld [vmem:[%s3 + $0x30] sm:$0xff]
    %v65 = vld [vmem:[%s3 + $0x38] sm:$0xff]
    %67 = vset.pattern.permute.xlu0 0
    %68 = vperm.xlu0 %67, %v58
    %v69 = vpop.permute.xlu0 %68
    %72 = vset.pattern.permute.xlu0 0
    %73 = vperm.xlu0 %72, %v59
    %v74 = vpop.permute.xlu0 %73
    %77 = vset.pattern.permute.xlu0 0
    %78 = vperm.xlu0 %77, %v60
    %v79 = vpop.permute.xlu0 %78
    %82 = vset.pattern.permute.xlu0 0
    %83 = vperm.xlu0 %82, %v61
    %v84 = vpop.permute.xlu0 %83
    %87 = vset.pattern.permute.xlu0 0
    %88 = vperm.xlu0 %87, %v62
    %v89 = vpop.permute.xlu0 %88
    %92 = vset.pattern.permute.xlu0 0
    %93 = vperm.xlu0 %92, %v63
    %v94 = vpop.permute.xlu0 %93
    %97 = vset.pattern.permute.xlu0 0
    %98 = vperm.xlu0 %97, %v64
    %v99 = vpop.permute.xlu0 %98
    %102 = vset.pattern.permute.xlu0 0
    %103 = vperm.xlu0 %102, %v65
    %v104 = vpop.permute.xlu0 %103
    %v114 = vunpack.c.l.b16 %v50
    %v115 = vunpack.c.l.b16 %v51
    %v116 = vunpack.c.l.b16 %v52
    %v117 = vunpack.c.l.b16 %v53
    %v118 = vunpack.c.l.b16 %v54
    %v119 = vunpack.c.l.b16 %v55
    %v120 = vunpack.c.l.b16 %v56
    %v121 = vunpack.c.l.b16 %v57
    %v122 = vpack.c.b16 %v115, %v114
    %v123 = vpack.c.b16 %v117, %v116
    %v124 = vpack.c.b16 %v119, %v118
    %v125 = vpack.c.b16 %v121, %v120
    %v134 = vunpack.c.l.b16 %v34
    %v135 = vunpack.c.h.b16 %v34
    %v136 = vunpack.c.l.b16 %v35
    %v137 = vunpack.c.l.b16 %v36
    %v138 = vunpack.c.h.b16 %v36
    %v139 = vunpack.c.l.b16 %v37
    %v140 = vunpack.c.l.b16 %v38
    %v141 = vunpack.c.h.b16 %v38
    %v142 = vunpack.c.l.b16 %v39
    %v143 = vunpack.c.l.b16 %v40
    %v144 = vunpack.c.h.b16 %v40
    %v145 = vunpack.c.l.b16 %v41
    %v146 = vpack.c.b16 %v137, %v134
    %v147 = vpack.c.b16 %v138, %v135
    %v148 = vpack.c.b16 %v139, %v136
    %v149 = vpack.c.b16 %v143, %v140
    %v150 = vpack.c.b16 %v144, %v141
    %v151 = vpack.c.b16 %v145, %v142
    %vm158 = vcmask 261120
    %v160 = vsel %vm158, %v122, 0
    %v163 = vsel %vm158, %v123, 0
    %v166 = vsel %vm158, %v124, 0
    %v169 = vsel %vm158, %v125, 0
    %171 = vmatprep.subr.bf16.mxu0 0
    %172 = vmatpush1.bf16.msra.mxu0 0
    %173 = vmatprep.subr.bf16.mxu0 0
    %174 = vmatpush1.bf16.msra.mxu0 0
    %175 = vmatprep.subr.bf16.mxu0 0
    %176 = vmatpush1.bf16.msra.mxu0 0
    %177 = vmatprep.subr.bf16.mxu0 0
    %178 = vmatpush1.bf16.msra.mxu0 0
    %179 = vmatprep.subr.bf16.mxu0 0
    %180 = vmatpush1.bf16.msra.mxu0 0
    %181 = vmatprep.subr.bf16.mxu0 0
    %182 = vmatpush1.bf16.msra.mxu0 0
    %183 = vmatprep.subr.bf16.mxu0 %v150
    %184 = vmatpush1.bf16.msra.mxu0 %v149
    %185 = vmatprep.subr.bf16.mxu0 %v147
    %186 = vmatpush1.bf16.msra.mxu0 %v146
    %187 = vmatprep.subr.bf16.mxu0 0
    %188 = vmatpush2.bf16.msra.mxu0 0
    %189 = vmatprep.subr.bf16.mxu0 0
    %190 = vmatpush2.bf16.msra.mxu0 0
    %191 = vmatprep.subr.bf16.mxu0 0
    %192 = vmatpush2.bf16.msra.mxu0 0
    %193 = vmatprep.subr.bf16.mxu0 0
    %194 = vmatpush2.bf16.msra.mxu0 0
    %195 = vmatprep.subr.bf16.mxu0 0
    %196 = vmatpush2.bf16.msra.mxu0 0
    %197 = vmatprep.subr.bf16.mxu0 0
    %198 = vmatpush2.bf16.msra.mxu0 0
    %199 = vmatprep.subr.bf16.mxu0 0
    %200 = vmatpush2.bf16.msra.mxu0 0
    %201 = vmatprep.subr.bf16.mxu0 0
    %202 = vmatpush2.bf16.msra.mxu0 0
    %203 = vmatprep.mubr.bf16.mxu0 0
    %204 = vmatmul.mubr.bf16.gmra.mxu0 %v160
    %v205 = vpop.f32.mrf.mxu0
    %v206 = vadd.f32 %v69, %v205
    %v207 = vpop.f32.mrf.mxu0
    %v208 = vadd.f32 %v69, %v207
    %v209 = vpop.f32.mrf.mxu0
    %v210 = vadd.f32 %v74, %v209
    %v211 = vpop.f32.mrf.mxu0
    %v212 = vadd.f32 %v74, %v211
    %213 = vmatprep.mubr.bf16.mxu0 0
    %214 = vmatmul.mubr.bf16.gmra.mxu0 %v163
    %v215 = vpop.f32.mrf.mxu0
    %v216 = vadd.f32 %v79, %v215
    %v217 = vpop.f32.mrf.mxu0
    %v218 = vadd.f32 %v79, %v217
    %v219 = vpop.f32.mrf.mxu0
    %v220 = vadd.f32 %v84, %v219
    %v221 = vpop.f32.mrf.mxu0
    %v222 = vadd.f32 %v84, %v221
    %223 = vmatprep.mubr.bf16.mxu0 0
    %224 = vmatmul.mubr.bf16.gmra.mxu0 %v166
    %v225 = vpop.f32.mrf.mxu0
    %v226 = vadd.f32 %v89, %v225
    %v227 = vpop.f32.mrf.mxu0
    %v228 = vadd.f32 %v89, %v227
    %v229 = vpop.f32.mrf.mxu0
    %v230 = vadd.f32 %v94, %v229
    %v231 = vpop.f32.mrf.mxu0
    %v232 = vadd.f32 %v94, %v231
    %233 = vmatprep.mubr.bf16.mxu0 0
    %234 = vmatmul.mubr.bf16.gmra.mxu0 %v169
    %v235 = vpop.f32.mrf.mxu0
    %v236 = vadd.f32 %v99, %v235
    %v237 = vpop.f32.mrf.mxu0
    %v238 = vadd.f32 %v99, %v237
    %v239 = vpop.f32.mrf.mxu0
    %v240 = vadd.f32 %v104, %v239
    %v241 = vpop.f32.mrf.mxu0
    %v242 = vadd.f32 %v104, %v241
    %243 = vdwg.mxu0
    %244 = vmatprep.subr.bf16.mxu0 0
    %245 = vmatpush1.bf16.msra.mxu0 0
    %246 = vmatprep.subr.bf16.mxu0 0
    %247 = vmatpush1.bf16.msra.mxu0 0
    %248 = vmatprep.subr.bf16.mxu0 0
    %249 = vmatpush1.bf16.msra.mxu0 0
    %250 = vmatprep.subr.bf16.mxu0 0
    %251 = vmatpush1.bf16.msra.mxu0 0
    %252 = vmatprep.subr.bf16.mxu0 0
    %253 = vmatpush1.bf16.msra.mxu0 0
    %254 = vmatprep.subr.bf16.mxu0 0
    %255 = vmatpush1.bf16.msra.mxu0 0
    %256 = vmatprep.subr.bf16.mxu0 0
    %257 = vmatpush1.bf16.msra.mxu0 %v151
    %258 = vmatprep.subr.bf16.mxu0 0
    %259 = vmatpush1.bf16.msra.mxu0 %v148
    %260 = vmatprep.subr.bf16.mxu0 0
    %261 = vmatpush2.bf16.msra.mxu0 0
    %262 = vmatprep.subr.bf16.mxu0 0
    %263 = vmatpush2.bf16.msra.mxu0 0
    %264 = vmatprep.subr.bf16.mxu0 0
    %265 = vmatpush2.bf16.msra.mxu0 0
    %266 = vmatprep.subr.bf16.mxu0 0
    %267 = vmatpush2.bf16.msra.mxu0 0
    %268 = vmatprep.subr.bf16.mxu0 0
    %269 = vmatpush2.bf16.msra.mxu0 0
    %270 = vmatprep.subr.bf16.mxu0 0
    %271 = vmatpush2.bf16.msra.mxu0 0
    %272 = vmatprep.subr.bf16.mxu0 0
    %273 = vmatpush2.bf16.msra.mxu0 0
    %274 = vmatprep.subr.bf16.mxu0 0
    %275 = vmatpush2.bf16.msra.mxu0 0
    %276 = vmatprep.mubr.bf16.mxu0 0
    %277 = vmatmul.mubr.bf16.gmra.mxu0 %v160
    %v278 = vpop.f32.mrf.mxu0
    %v279 = vadd.f32 %v69, %v278
    %v280 = vpop.f32.mrf.mxu0
    %v281 = vpop.f32.mrf.mxu0
    %v282 = vadd.f32 %v74, %v281
    %v283 = vpop.f32.mrf.mxu0
    %284 = vmatprep.mubr.bf16.mxu0 0
    %285 = vmatmul.mubr.bf16.gmra.mxu0 %v163
    %v286 = vpop.f32.mrf.mxu0
    %v287 = vadd.f32 %v79, %v286
    %v288 = vpop.f32.mrf.mxu0
    %v289 = vpop.f32.mrf.mxu0
    %v290 = vadd.f32 %v84, %v289
    %v291 = vpop.f32.mrf.mxu0
    %292 = vmatprep.mubr.bf16.mxu0 0
    %293 = vmatmul.mubr.bf16.gmra.mxu0 %v166
    %v294 = vpop.f32.mrf.mxu0
    %v295 = vadd.f32 %v89, %v294
    %v296 = vpop.f32.mrf.mxu0
    %v297 = vpop.f32.mrf.mxu0
    %v298 = vadd.f32 %v94, %v297
    %v299 = vpop.f32.mrf.mxu0
    %300 = vmatprep.mubr.bf16.mxu0 0
    %301 = vmatmul.mubr.bf16.gmra.mxu0 %v169
    %v302 = vpop.f32.mrf.mxu0
    %v303 = vadd.f32 %v99, %v302
    %v304 = vpop.f32.mrf.mxu0
    %v305 = vpop.f32.mrf.mxu0
    %v306 = vadd.f32 %v104, %v305
    %v307 = vpop.f32.mrf.mxu0
    %308 = vdwg.mxu0
    %v309 = vmax.f32 %v206, 0.0
    %v310 = vmax.f32 %v208, 0.0
    %v311 = vmax.f32 %v279, 0.0
    %v312 = vmax.f32 %v210, 0.0
    %v313 = vmax.f32 %v212, 0.0
    %v314 = vmax.f32 %v282, 0.0
    %v315 = vmax.f32 %v216, 0.0
    %v316 = vmax.f32 %v218, 0.0
    %v317 = vmax.f32 %v287, 0.0
    %v318 = vmax.f32 %v220, 0.0
    %v319 = vmax.f32 %v222, 0.0
    %v320 = vmax.f32 %v290, 0.0
    %v321 = vmax.f32 %v226, 0.0
    %v322 = vmax.f32 %v228, 0.0
    %v323 = vmax.f32 %v295, 0.0
    %v324 = vmax.f32 %v230, 0.0
    %v325 = vmax.f32 %v232, 0.0
    %v326 = vmax.f32 %v298, 0.0
    %v327 = vmax.f32 %v236, 0.0
    %v328 = vmax.f32 %v238, 0.0
    %v329 = vmax.f32 %v303, 0.0
    %v330 = vmax.f32 %v240, 0.0
    %v331 = vmax.f32 %v242, 0.0
    %v332 = vmax.f32 %v306, 0.0
    %v333 = vpack.c.bf16 %v312, %v309
    %v334 = vpack.c.bf16 %v313, %v310
    %v335 = vpack.c.bf16 %v314, %v311
    %v336 = vpack.c.bf16 %v318, %v315
    %v337 = vpack.c.bf16 %v319, %v316
    %v338 = vpack.c.bf16 %v320, %v317
    %v339 = vpack.c.bf16 %v324, %v321
    %v340 = vpack.c.bf16 %v325, %v322
    %v341 = vpack.c.bf16 %v326, %v323
    %v342 = vpack.c.bf16 %v330, %v327
    %v343 = vpack.c.bf16 %v331, %v328
    %v344 = vpack.c.bf16 %v332, %v329
    %v345 = vld [vmem:[%s4] sm:$0xf]
    %v346 = vld [vmem:[%s4 + $0x4] sm:$0xf]
    %v347 = vld [vmem:[%s4 + $0x8] sm:$0xf]
    %v348 = vld [vmem:[%s4 + $0xc] sm:$0xf]
    %v349 = vld [vmem:[%s4 + $0x10] sm:$0xf]
    %v350 = vld [vmem:[%s4 + $0x14] sm:$0xf]
    %v351 = vld [vmem:[%s4 + $0x18] sm:$0xf]
    %v352 = vld [vmem:[%s4 + $0x1c] sm:$0xf]
    %v353 = vld [vmem:[%s5] sm:$0xff]
    %v354 = vld [vmem:[%s5 + $0x8] sm:$0xff]
    %v355 = vld [vmem:[%s5 + $0x10] sm:$0xff]
    %v356 = vld [vmem:[%s5 + $0x18] sm:$0xff]
    %v357 = vld [vmem:[%s5 + $0x20] sm:$0xff]
    %v358 = vld [vmem:[%s5 + $0x28] sm:$0xff]
    %v359 = vld [vmem:[%s5 + $0x30] sm:$0xff]
    %v360 = vld [vmem:[%s5 + $0x38] sm:$0xff]
    %362 = vset.pattern.permute.xlu0 0
    %363 = vperm.xlu0 %362, %v353
    %v364 = vpop.permute.xlu0 %363
    %367 = vset.pattern.permute.xlu0 0
    %368 = vperm.xlu0 %367, %v354
    %v369 = vpop.permute.xlu0 %368
    %372 = vset.pattern.permute.xlu0 0
    %373 = vperm.xlu0 %372, %v355
    %v374 = vpop.permute.xlu0 %373
    %377 = vset.pattern.permute.xlu0 0
    %378 = vperm.xlu0 %377, %v356
    %v379 = vpop.permute.xlu0 %378
    %382 = vset.pattern.permute.xlu0 0
    %383 = vperm.xlu0 %382, %v357
    %v384 = vpop.permute.xlu0 %383
    %387 = vset.pattern.permute.xlu0 0
    %388 = vperm.xlu0 %387, %v358
    %v389 = vpop.permute.xlu0 %388
    %392 = vset.pattern.permute.xlu0 0
    %393 = vperm.xlu0 %392, %v359
    %v394 = vpop.permute.xlu0 %393
    %397 = vset.pattern.permute.xlu0 0
    %398 = vperm.xlu0 %397, %v360
    %v399 = vpop.permute.xlu0 %398
    %v409 = vunpack.c.l.b16 %v345
    %v410 = vunpack.c.l.b16 %v346
    %v411 = vunpack.c.l.b16 %v347
    %v412 = vunpack.c.l.b16 %v348
    %v413 = vunpack.c.l.b16 %v349
    %v414 = vunpack.c.l.b16 %v350
    %v415 = vunpack.c.l.b16 %v351
    %v416 = vunpack.c.l.b16 %v352
    %v417 = vpack.c.b16 %v410, %v409
    %v418 = vpack.c.b16 %v412, %v411
    %v419 = vpack.c.b16 %v414, %v413
    %v420 = vpack.c.b16 %v416, %v415
    %vm421 = vcmask 523264
    %v423 = vsel %vm421, %v417, 0
    %v426 = vsel %vm421, %v418, 0
    %v429 = vsel %vm421, %v419, 0
    %v432 = vsel %vm421, %v420, 0
    %434 = vmatprep.subr.bf16.mxu0 0
    %435 = vmatpush1.bf16.msra.mxu0 0
    %436 = vmatprep.subr.bf16.mxu0 0
    %437 = vmatpush1.bf16.msra.mxu0 0
    %438 = vmatprep.subr.bf16.mxu0 0
    %439 = vmatpush1.bf16.msra.mxu0 0
    %440 = vmatprep.subr.bf16.mxu0 0
    %441 = vmatpush1.bf16.msra.mxu0 0
    %442 = vmatprep.subr.bf16.mxu0 %v343
    %443 = vmatpush1.bf16.msra.mxu0 %v342
    %444 = vmatprep.subr.bf16.mxu0 %v340
    %445 = vmatpush1.bf16.msra.mxu0 %v339
    %446 = vmatprep.subr.bf16.mxu0 %v337
    %447 = vmatpush1.bf16.msra.mxu0 %v336
    %448 = vmatprep.subr.bf16.mxu0 %v334
    %449 = vmatpush1.bf16.msra.mxu0 %v333
    %450 = vmatprep.subr.bf16.mxu0 0
    %451 = vmatpush2.bf16.msra.mxu0 0
    %452 = vmatprep.subr.bf16.mxu0 0
    %453 = vmatpush2.bf16.msra.mxu0 0
    %454 = vmatprep.subr.bf16.mxu0 0
    %455 = vmatpush2.bf16.msra.mxu0 0
    %456 = vmatprep.subr.bf16.mxu0 0
    %457 = vmatpush2.bf16.msra.mxu0 0
    %458 = vmatprep.subr.bf16.mxu0 0
    %459 = vmatpush2.bf16.msra.mxu0 0
    %460 = vmatprep.subr.bf16.mxu0 0
    %461 = vmatpush2.bf16.msra.mxu0 0
    %462 = vmatprep.subr.bf16.mxu0 0
    %463 = vmatpush2.bf16.msra.mxu0 0
    %464 = vmatprep.subr.bf16.mxu0 0
    %465 = vmatpush2.bf16.msra.mxu0 0
    %466 = vmatprep.mubr.bf16.mxu0 0
    %467 = vmatmul.mubr.bf16.gmra.mxu0 %v423
    %v468 = vpop.f32.mrf.mxu0
    %v469 = vadd.f32 %v364, %v468
    %v470 = vpop.f32.mrf.mxu0
    %v471 = vadd.f32 %v364, %v470
    %v472 = vpop.f32.mrf.mxu0
    %v473 = vadd.f32 %v369, %v472
    %v474 = vpop.f32.mrf.mxu0
    %v475 = vadd.f32 %v369, %v474
    %476 = vmatprep.mubr.bf16.mxu0 0
    %477 = vmatmul.mubr.bf16.gmra.mxu0 %v426
    %v478 = vpop.f32.mrf.mxu0
    %v479 = vadd.f32 %v374, %v478
    %v480 = vpop.f32.mrf.mxu0
    %v481 = vadd.f32 %v374, %v480
    %v482 = vpop.f32.mrf.mxu0
    %v483 = vadd.f32 %v379, %v482
    %v484 = vpop.f32.mrf.mxu0
    %v485 = vadd.f32 %v379, %v484
    %486 = vmatprep.mubr.bf16.mxu0 0
    %487 = vmatmul.mubr.bf16.gmra.mxu0 %v429
    %v488 = vpop.f32.mrf.mxu0
    %v489 = vadd.f32 %v384, %v488
    %v490 = vpop.f32.mrf.mxu0
    %v491 = vadd.f32 %v384, %v490
    %v492 = vpop.f32.mrf.mxu0
    %v493 = vadd.f32 %v389, %v492
    %v494 = vpop.f32.mrf.mxu0
    %v495 = vadd.f32 %v389, %v494
    %496 = vmatprep.mubr.bf16.mxu0 0
    %497 = vmatmul.mubr.bf16.gmra.mxu0 %v432
    %v498 = vpop.f32.mrf.mxu0
    %v499 = vadd.f32 %v394, %v498
    %v500 = vpop.f32.mrf.mxu0
    %v501 = vadd.f32 %v394, %v500
    %v502 = vpop.f32.mrf.mxu0
    %v503 = vadd.f32 %v399, %v502
    %v504 = vpop.f32.mrf.mxu0
    %v505 = vadd.f32 %v399, %v504
    %506 = vdwg.mxu0
    %507 = vmatprep.subr.bf16.mxu0 0
    %508 = vmatpush1.bf16.msra.mxu0 0
    %509 = vmatprep.subr.bf16.mxu0 0
    %510 = vmatpush1.bf16.msra.mxu0 0
    %511 = vmatprep.subr.bf16.mxu0 0
    %512 = vmatpush1.bf16.msra.mxu0 0
    %513 = vmatprep.subr.bf16.mxu0 0
    %514 = vmatpush1.bf16.msra.mxu0 0
    %515 = vmatprep.subr.bf16.mxu0 0
    %516 = vmatpush1.bf16.msra.mxu0 %v344
    %517 = vmatprep.subr.bf16.mxu0 0
    %518 = vmatpush1.bf16.msra.mxu0 %v341
    %519 = vmatprep.subr.bf16.mxu0 0
    %520 = vmatpush1.bf16.msra.mxu0 %v338
    %521 = vmatprep.subr.bf16.mxu0 0
    %522 = vmatpush1.bf16.msra.mxu0 %v335
    %523 = vmatprep.subr.bf16.mxu0 0
    %524 = vmatpush2.bf16.msra.mxu0 0
    %525 = vmatprep.subr.bf16.mxu0 0
    %526 = vmatpush2.bf16.msra.mxu0 0
    %527 = vmatprep.subr.bf16.mxu0 0
    %528 = vmatpush2.bf16.msra.mxu0 0
    %529 = vmatprep.subr.bf16.mxu0 0
    %530 = vmatpush2.bf16.msra.mxu0 0
    %531 = vmatprep.subr.bf16.mxu0 0
    %532 = vmatpush2.bf16.msra.mxu0 0
    %533 = vmatprep.subr.bf16.mxu0 0
    %534 = vmatpush2.bf16.msra.mxu0 0
    %535 = vmatprep.subr.bf16.mxu0 0
    %536 = vmatpush2.bf16.msra.mxu0 0
    %537 = vmatprep.subr.bf16.mxu0 0
    %538 = vmatpush2.bf16.msra.mxu0 0
    %539 = vmatprep.mubr.bf16.mxu0 0
    %540 = vmatmul.mubr.bf16.gmra.mxu0 %v423
    %v541 = vpop.f32.mrf.mxu0
    %v542 = vadd.f32 %v364, %v541
    %v543 = vpop.f32.mrf.mxu0
    %v544 = vpop.f32.mrf.mxu0
    %v545 = vadd.f32 %v369, %v544
    %v546 = vpop.f32.mrf.mxu0
    %547 = vmatprep.mubr.bf16.mxu0 0
    %548 = vmatmul.mubr.bf16.gmra.mxu0 %v426
    %v549 = vpop.f32.mrf.mxu0
    %v550 = vadd.f32 %v374, %v549
    %v551 = vpop.f32.mrf.mxu0
    %v552 = vpop.f32.mrf.mxu0
    %v553 = vadd.f32 %v379, %v552
    %v554 = vpop.f32.mrf.mxu0
    %555 = vmatprep.mubr.bf16.mxu0 0
    %556 = vmatmul.mubr.bf16.gmra.mxu0 %v429
    %v557 = vpop.f32.mrf.mxu0
    %v558 = vadd.f32 %v384, %v557
    %v559 = vpop.f32.mrf.mxu0
    %v560 = vpop.f32.mrf.mxu0
    %v561 = vadd.f32 %v389, %v560
    %v562 = vpop.f32.mrf.mxu0
    %563 = vmatprep.mubr.bf16.mxu0 0
    %564 = vmatmul.mubr.bf16.gmra.mxu0 %v432
    %v565 = vpop.f32.mrf.mxu0
    %v566 = vadd.f32 %v394, %v565
    %v567 = vpop.f32.mrf.mxu0
    %v568 = vpop.f32.mrf.mxu0
    %v569 = vadd.f32 %v399, %v568
    %v570 = vpop.f32.mrf.mxu0
    %571 = vdwg.mxu0
    %v572 = vmax.f32 %v469, 0.0
    %v573 = vmax.f32 %v471, 0.0
    %v574 = vmax.f32 %v542, 0.0
    %v575 = vmax.f32 %v473, 0.0
    %v576 = vmax.f32 %v475, 0.0
    %v577 = vmax.f32 %v545, 0.0
    %v578 = vmax.f32 %v479, 0.0
    %v579 = vmax.f32 %v481, 0.0
    %v580 = vmax.f32 %v550, 0.0
    %v581 = vmax.f32 %v483, 0.0
    %v582 = vmax.f32 %v485, 0.0
    %v583 = vmax.f32 %v553, 0.0
    %v584 = vmax.f32 %v489, 0.0
    %v585 = vmax.f32 %v491, 0.0
    %v586 = vmax.f32 %v558, 0.0
    %v587 = vmax.f32 %v493, 0.0
    %v588 = vmax.f32 %v495, 0.0
    %v589 = vmax.f32 %v561, 0.0
    %v590 = vmax.f32 %v499, 0.0
    %v591 = vmax.f32 %v501, 0.0
    %v592 = vmax.f32 %v566, 0.0
    %v593 = vmax.f32 %v503, 0.0
    %v594 = vmax.f32 %v505, 0.0
    %v595 = vmax.f32 %v569, 0.0
    %v596 = vpack.c.bf16 %v575, %v572
    %v597 = vpack.c.bf16 %v576, %v573
    %v598 = vpack.c.bf16 %v577, %v574
    %v599 = vpack.c.bf16 %v581, %v578
    %v600 = vpack.c.bf16 %v582, %v579
    %v601 = vpack.c.bf16 %v583, %v580
    %v602 = vpack.c.bf16 %v587, %v584
    %v603 = vpack.c.bf16 %v588, %v585
    %v604 = vpack.c.bf16 %v589, %v586
    %v605 = vpack.c.bf16 %v593, %v590
    %v606 = vpack.c.bf16 %v594, %v591
    %v607 = vpack.c.bf16 %v595, %v592
    %v608 = vld [vmem:[%s6] sm:$0x3]
    %v609 = vld [vmem:[%s7] sm:$0x3]
    %v610 = vld [vmem:[%s8] sm:$0x7]
    %v619 = vunpack.c.l.b16 %v42
    %v620 = vunpack.c.h.b16 %v42
    %v621 = vunpack.c.l.b16 %v43
    %v622 = vunpack.c.l.b16 %v44
    %v623 = vunpack.c.h.b16 %v44
    %v624 = vunpack.c.l.b16 %v45
    %v625 = vunpack.c.l.b16 %v46
    %v626 = vunpack.c.h.b16 %v46
    %v627 = vunpack.c.l.b16 %v47
    %v628 = vunpack.c.l.b16 %v48
    %v629 = vunpack.c.h.b16 %v48
    %v630 = vunpack.c.l.b16 %v49
    %v631 = vpack.c.b16 %v622, %v619
    %v632 = vpack.c.b16 %v623, %v620
    %v633 = vpack.c.b16 %v624, %v621
    %v634 = vpack.c.b16 %v628, %v625
    %v635 = vpack.c.b16 %v629, %v626
    %v636 = vpack.c.b16 %v630, %v627
    %v644 = vsel %vm158, %v609, 0
    %646 = vmatprep.subr.bf16.mxu0 0
    %647 = vmatpush1.bf16.msra.mxu0 0
    %648 = vmatprep.subr.bf16.mxu0 0
    %649 = vmatpush1.bf16.msra.mxu0 0
    %650 = vmatprep.subr.bf16.mxu0 0
    %651 = vmatpush1.bf16.msra.mxu0 0
    %652 = vmatprep.subr.bf16.mxu0 0
    %653 = vmatpush1.bf16.msra.mxu0 0
    %654 = vmatprep.subr.bf16.mxu0 0
    %655 = vmatpush1.bf16.msra.mxu0 0
    %656 = vmatprep.subr.bf16.mxu0 0
    %657 = vmatpush1.bf16.msra.mxu0 0
    %658 = vmatprep.subr.bf16.mxu0 %v635
    %659 = vmatpush1.bf16.msra.mxu0 %v634
    %660 = vmatprep.subr.bf16.mxu0 %v632
    %661 = vmatpush1.bf16.msra.mxu0 %v631
    %662 = vmatprep.subr.bf16.mxu0 0
    %663 = vmatpush2.bf16.msra.mxu0 0
    %664 = vmatprep.subr.bf16.mxu0 0
    %665 = vmatpush2.bf16.msra.mxu0 0
    %666 = vmatprep.subr.bf16.mxu0 0
    %667 = vmatpush2.bf16.msra.mxu0 0
    %668 = vmatprep.subr.bf16.mxu0 0
    %669 = vmatpush2.bf16.msra.mxu0 0
    %670 = vmatprep.subr.bf16.mxu0 0
    %671 = vmatpush2.bf16.msra.mxu0 0
    %672 = vmatprep.subr.bf16.mxu0 0
    %673 = vmatpush2.bf16.msra.mxu0 0
    %674 = vmatprep.subr.bf16.mxu0 0
    %675 = vmatpush2.bf16.msra.mxu0 0
    %676 = vmatprep.subr.bf16.mxu0 0
    %677 = vmatpush2.bf16.msra.mxu0 0
    %678 = vmatprep.mubr.bf16.mxu0 0
    %679 = vmatmul.mubr.bf16.gmra.mxu0 %v644
    %v680 = vpop.f32.mrf.mxu0
    %v681 = vadd.f32 0.0, %v680
    %v682 = vpop.f32.mrf.mxu0
    %v683 = vadd.f32 0.0, %v682
    %v684 = vpop.f32.mrf.mxu0
    %v685 = vpop.f32.mrf.mxu0
    %686 = vdwg.mxu0
    %687 = vmatprep.subr.bf16.mxu0 0
    %688 = vmatpush1.bf16.msra.mxu0 0
    %689 = vmatprep.subr.bf16.mxu0 0
    %690 = vmatpush1.bf16.msra.mxu0 0
    %691 = vmatprep.subr.bf16.mxu0 0
    %692 = vmatpush1.bf16.msra.mxu0 0
    %693 = vmatprep.subr.bf16.mxu0 0
    %694 = vmatpush1.bf16.msra.mxu0 0
    %695 = vmatprep.subr.bf16.mxu0 0
    %696 = vmatpush1.bf16.msra.mxu0 0
    %697 = vmatprep.subr.bf16.mxu0 0
    %698 = vmatpush1.bf16.msra.mxu0 0
    %699 = vmatprep.subr.bf16.mxu0 0
    %700 = vmatpush1.bf16.msra.mxu0 %v636
    %701 = vmatprep.subr.bf16.mxu0 0
    %702 = vmatpush1.bf16.msra.mxu0 %v633
    %703 = vmatprep.subr.bf16.mxu0 0
    %704 = vmatpush2.bf16.msra.mxu0 0
    %705 = vmatprep.subr.bf16.mxu0 0
    %706 = vmatpush2.bf16.msra.mxu0 0
    %707 = vmatprep.subr.bf16.mxu0 0
    %708 = vmatpush2.bf16.msra.mxu0 0
    %709 = vmatprep.subr.bf16.mxu0 0
    %710 = vmatpush2.bf16.msra.mxu0 0
    %711 = vmatprep.subr.bf16.mxu0 0
    %712 = vmatpush2.bf16.msra.mxu0 0
    %713 = vmatprep.subr.bf16.mxu0 0
    %714 = vmatpush2.bf16.msra.mxu0 0
    %715 = vmatprep.subr.bf16.mxu0 0
    %716 = vmatpush2.bf16.msra.mxu0 0
    %717 = vmatprep.subr.bf16.mxu0 0
    %718 = vmatpush2.bf16.msra.mxu0 0
    %719 = vmatprep.mubr.bf16.mxu0 0
    %720 = vmatmul.mubr.bf16.gmra.mxu0 %v644
    %v721 = vpop.f32.mrf.mxu0
    %v722 = vadd.f32 0.0, %v721
    %v723 = vpop.f32.mrf.mxu0
    %v724 = vpop.f32.mrf.mxu0
    %v725 = vpop.f32.mrf.mxu0
    %726 = vdwg.mxu0
    %v728 = vsel %vm421, %v608, 0
    %730 = vmatprep.subr.bf16.mxu0 0
    %731 = vmatpush1.bf16.msra.mxu0 0
    %732 = vmatprep.subr.bf16.mxu0 0
    %733 = vmatpush1.bf16.msra.mxu0 0
    %734 = vmatprep.subr.bf16.mxu0 0
    %735 = vmatpush1.bf16.msra.mxu0 0
    %736 = vmatprep.subr.bf16.mxu0 0
    %737 = vmatpush1.bf16.msra.mxu0 0
    %738 = vmatprep.subr.bf16.mxu0 %v606
    %739 = vmatpush1.bf16.msra.mxu0 %v605
    %740 = vmatprep.subr.bf16.mxu0 %v603
    %741 = vmatpush1.bf16.msra.mxu0 %v602
    %742 = vmatprep.subr.bf16.mxu0 %v600
    %743 = vmatpush1.bf16.msra.mxu0 %v599
    %744 = vmatprep.subr.bf16.mxu0 %v597
    %745 = vmatpush1.bf16.msra.mxu0 %v596
    %746 = vmatprep.subr.bf16.mxu0 0
    %747 = vmatpush2.bf16.msra.mxu0 0
    %748 = vmatprep.subr.bf16.mxu0 0
    %749 = vmatpush2.bf16.msra.mxu0 0
    %750 = vmatprep.subr.bf16.mxu0 0
    %751 = vmatpush2.bf16.msra.mxu0 0
    %752 = vmatprep.subr.bf16.mxu0 0
    %753 = vmatpush2.bf16.msra.mxu0 0
    %754 = vmatprep.subr.bf16.mxu0 0
    %755 = vmatpush2.bf16.msra.mxu0 0
    %756 = vmatprep.subr.bf16.mxu0 0
    %757 = vmatpush2.bf16.msra.mxu0 0
    %758 = vmatprep.subr.bf16.mxu0 0
    %759 = vmatpush2.bf16.msra.mxu0 0
    %760 = vmatprep.subr.bf16.mxu0 0
    %761 = vmatpush2.bf16.msra.mxu0 0
    %762 = vmatprep.mubr.bf16.mxu0 0
    %763 = vmatmul.mubr.bf16.gmra.mxu0 %v728
    %v764 = vpop.f32.mrf.mxu0
    %v765 = vadd.f32 %v681, %v764
    %v766 = vpop.f32.mrf.mxu0
    %v767 = vadd.f32 %v683, %v766
    %v768 = vpop.f32.mrf.mxu0
    %v769 = vpop.f32.mrf.mxu0
    %770 = vdwg.mxu0
    %771 = vmatprep.subr.bf16.mxu0 0
    %772 = vmatpush1.bf16.msra.mxu0 0
    %773 = vmatprep.subr.bf16.mxu0 0
    %774 = vmatpush1.bf16.msra.mxu0 0
    %775 = vmatprep.subr.bf16.mxu0 0
    %776 = vmatpush1.bf16.msra.mxu0 0
    %777 = vmatprep.subr.bf16.mxu0 0
    %778 = vmatpush1.bf16.msra.mxu0 0
    %779 = vmatprep.subr.bf16.mxu0 0
    %780 = vmatpush1.bf16.msra.mxu0 %v607
    %781 = vmatprep.subr.bf16.mxu0 0
    %782 = vmatpush1.bf16.msra.mxu0 %v604
    %783 = vmatprep.subr.bf16.mxu0 0
    %784 = vmatpush1.bf16.msra.mxu0 %v601
    %785 = vmatprep.subr.bf16.mxu0 0
    %786 = vmatpush1.bf16.msra.mxu0 %v598
    %787 = vmatprep.subr.bf16.mxu0 0
    %788 = vmatpush2.bf16.msra.mxu0 0
    %789 = vmatprep.subr.bf16.mxu0 0
    %790 = vmatpush2.bf16.msra.mxu0 0
    %791 = vmatprep.subr.bf16.mxu0 0
    %792 = vmatpush2.bf16.msra.mxu0 0
    %793 = vmatprep.subr.bf16.mxu0 0
    %794 = vmatpush2.bf16.msra.mxu0 0
    %795 = vmatprep.subr.bf16.mxu0 0
    %796 = vmatpush2.bf16.msra.mxu0 0
    %797 = vmatprep.subr.bf16.mxu0 0
    %798 = vmatpush2.bf16.msra.mxu0 0
    %799 = vmatprep.subr.bf16.mxu0 0
    %800 = vmatpush2.bf16.msra.mxu0 0
    %801 = vmatprep.subr.bf16.mxu0 0
    %802 = vmatpush2.bf16.msra.mxu0 0
    %803 = vmatprep.mubr.bf16.mxu0 0
    %804 = vmatmul.mubr.bf16.gmra.mxu0 %v728
    %v805 = vpop.f32.mrf.mxu0
    %v806 = vadd.f32 %v722, %v805
    %v807 = vpop.f32.mrf.mxu0
    %v808 = vpop.f32.mrf.mxu0
    %v809 = vpop.f32.mrf.mxu0
    %810 = vdwg.mxu0
    %812 = vset.pattern.permute.xlu0 0
    %813 = vperm.xlu0 %812, %v610
    %v814 = vpop.permute.xlu0 %813
    %v816 = vadd.f32 %v765, %v814
    %v817 = vadd.f32 %v767, %v814
    %v818 = vadd.f32 %v806, %v814
    %v821 = vcombine.low %v816, %v817
    %823 = vst [vmem:[#allocation2] sm:$0x77] %v821
    %824 = vst [vmem:[#allocation2 + $0x8] sm:$0x7] %v818
    // Predicated region
    $region38: #{tpu_custom_call.1} parent=1 // pred_check
      _
    $region39: #{tpu_custom_call.1} parent=1 // pred_check_branch
      %826 = sbr.rel (0) target = $region41
    $region40: #{tpu_custom_call.1} parent=1 // pred_region
      %s828 = ssub.s32 192, 192
      %829 = vsyncadd [#allocation3], %s828
      %s831 = sshll.u32 [#allocation2], 4
      %s832 = int_to_ptr.vmem [resolvable:$true] %s831
      %834 = dma.vmem_to_hbm [thread:$0]  %s832, 192, %s9, [#allocation3]
    $region41: #{tpu_custom_call.1} parent=1 // pred_fallthru
      _
    // Predicated region
    $region42: #{tpu_custom_call.1} parent=1 // pred_check
      _
    $region43: #{tpu_custom_call.1} parent=1 // pred_check_branch
      %836 = sbr.rel (0) target = $region45
    $region44: #{tpu_custom_call.1} parent=1 // pred_region
      %837 = dma.done [#allocation3], 192
    $region45: #{tpu_custom_call.1} parent=1 // pred_fallthru
      _
    %838 = vsyncpa [#allocation3], 1

</llo_original>
